<compile_context>
chip_gen: v6e
topology: v6e:2x2x1
jax: 0.10.0
libtpu: 0.0.40
codegen_flags: <defaults>
</compile_context>

<pallas_src>
import numpy as np
import jax
import jax.numpy as jnp
from jax.experimental import pallas as pl
from jax.experimental.pallas import tpu as pltpu


# --------------------------------------------------------------------------------------
# Kernel
# --------------------------------------------------------------------------------------
def ldawccn_kernel(x12_ref, lda_wT_ref, lda_b_ref, wccn_wT_ref, wccn_b_ref,
                   w1_ref, b1_ref, w2_ref, b2_ref, out_ref):
    f32 = jnp.float32

    # ---- embed: lda -> wccn -> normalize on the stacked (2B, D_IN) batch (bf16 MXU dots,
    # f32 accumulation, f32 bias / normalize) ----
    z = jnp.dot(x12_ref[...], lda_wT_ref[...], preferred_element_type=f32) + lda_b_ref[...]
    z = jnp.dot(z.astype(wccn_wT_ref.dtype), wccn_wT_ref[...],
                preferred_element_type=f32) + wccn_b_ref[...]
    # F.normalize: z / max(||z||, 1e-12)  ==  z * rsqrt(max(||z||^2, 1e-24))   (EUP rsqrt)
    e = z * jax.lax.rsqrt(jnp.maximum(jnp.sum(z * z, axis=1, keepdims=True), 1e-24))  # (2B, D)

    twoB, D = e.shape
    B = twoB // 2
    a = e[:B]
    b = e[B:]

    # ---- fc1 feature row  G = [vec(dif), vec(sam_full), a+b]  (B, 2D^2 + D) ----
    # Built column-block by column-block with broadcast-multiplies and one lane concat:
    # no (B,D,D) tensors, no reshapes, no serial accumulation chain.
    cols = []
    for i in range(D):                                    # dif[:, i, :] = a_i * b + b_i * a
        cols.append(a[:, i:i + 1] * b + b[:, i:i + 1] * a)
    for i in range(D):                                    # sam[:, i, :] = a_i * a + b_i * b
        cols.append(a[:, i:i + 1] * a + b[:, i:i + 1] * b)
    cols.append(a + b)
    g = jnp.concatenate(cols, axis=1).astype(w1_ref.dtype)        # (B, 2D^2 + D) bf16

    # ---- fc1: single bf16 GEMM (K = 2D^2 + D), f32 accumulate; ReLU.  Dropout == identity. ----
    h = jnp.dot(g, w1_ref[...], preferred_element_type=f32) + b1_ref[...]
    h = jnp.maximum(h, 0.0)                                       # (B, M) f32

    # ---- fc2: VPU multiply + cross-lane (XLU) reduce against the real (1, M) row; broadcast
    # the logit into the lane-padded output slab -> unmasked lane-dense store ----
    logit = jnp.sum(h * w2_ref[...].astype(f32), axis=1, keepdims=True) + b2_ref[...]
    out_ref[...] = jnp.broadcast_to(logit, out_ref.shape)


# --------------------------------------------------------------------------------------
# One-time weight re-layout (hoisted out of the per-call path)
# --------------------------------------------------------------------------------------
def prepare_params(params, weight_dtype=jnp.bfloat16):
    lda_w, lda_b, wccn_w, wccn_b, w1, b1, w2, b2 = params
    D = lda_w.shape[0]
    M = w1.shape[0]
    n_tri = D * (D + 1) // 2
    assert w1.shape[1] == D * D + n_tri + D, "fc1 width must match 'sam_compress' feature width"
    # BasicNet's output layer is a single logit; anything wider would be silently truncated.
    assert w2.shape == (1, M) and b2.shape == (1,), "expected a single-logit output head"

    # Pad fc1 output dim to a multiple of 128: zero rows -> relu(0)=0 -> zero fc2 columns, so the
    # result is unchanged and every (B, M) slab stays lane-aligned.
    Mp = ((M + 127) // 128) * 128
    if Mp != M:
        w1 = jnp.concatenate([w1, jnp.zeros((Mp - M, w1.shape[1]), w1.dtype)], axis=0)
        b1 = jnp.concatenate([b1, jnp.zeros((Mp - M,), b1.dtype)], axis=0)
        w2 = jnp.concatenate([w2, jnp.zeros((w2.shape[0], Mp - M), w2.dtype)], axis=1)
        M = Mp

    wd_f = w1[:, :D * D].T.astype(jnp.float32)                      # (D^2, M)   <-> vec(dif)
    wt = w1[:, D * D:D * D + n_tri].T.astype(jnp.float32)           # (n_tri, M) <-> sam triu
    wa_f = w1[:, D * D + n_tri:].T.astype(jnp.float32)              # (D, M)     <-> a + b

    # Scatter triu weights into a full (D^2, M) upper-triangular block (row i*D + j).  Exact:
    # sam is symmetric and the scattered matrix is zero below the diagonal, so the dense D^2
    # contraction equals the original triu contraction.  No Ws - Wd subtraction is ever formed,
    # so there is no bf16 cancellation risk.
    iu0, iu1 = np.triu_indices(D)
    ws_f = jnp.zeros((D * D, M), jnp.float32).at[iu0 * D + iu1, :].set(wt)

    # Expanded fc1 weight, (2D^2 + D, M), m-minor.  If an M- or K-blocked grid is ever added,
    # blocks of this layout are contiguous lane-aligned tiles (no strided DMA descriptors).
    w1_full = jnp.concatenate([wd_f, ws_f, wa_f], axis=0).astype(weight_dtype)

    return (
        lda_w.T.astype(weight_dtype),               # (D_IN, D)  bf16 embed weights
        lda_b.reshape(1, D).astype(jnp.float32),
        wccn_w.T.astype(weight_dtype),              # (D, D)
        wccn_b.reshape(1, D).astype(jnp.float32),
        w1_full,                                    # (2D^2 + D, M) bf16 -- dominant DMA
        b1.reshape(1, M).astype(jnp.float32),
        w2.reshape(1, M).astype(weight_dtype),      # real fc2 row only (no 128x lane padding)
        b2.reshape(1, 1).astype(jnp.float32),
    )


# --------------------------------------------------------------------------------------
# Forward wrapper
# --------------------------------------------------------------------------------------
def ldawccn_forward(x1, x2, prep, out_pad=128):
    (lda_wT, lda_b, wccn_wT, wccn_b, w1_full, b1, w2_row, b2) = prep
    assert x1.shape == x2.shape
    B, D_IN = x1.shape
    D = lda_wT.shape[1]
    F, M = w1_full.shape

    # Stack the pair so the embed stage is one matmul per layer; bf16 inputs feed the MXU's
    # native single-pass path (accumulation stays f32 in-kernel).
    x12 = jnp.concatenate([x1, x2], axis=0).astype(lda_wT.dtype)

    inputs = (x12, lda_wT, lda_b, wccn_wT, wccn_b, w1_full, b1, w2_row, b2)

    flops = int(2 * (2 * B) * (D_IN * D + D * D)      # lda + wccn
                + 5 * B * D * D                       # feature build (VPU)
                + 2 * B * F * M                       # fc1 GEMM (K = 2D^2 + D)
                + 3 * B * M)                          # fc2 multiply + lane reduce
    bytes_accessed = int(sum(int(np.prod(t.shape)) * t.dtype.itemsize for t in inputs)
                         + B * out_pad * 4)
    cost = pl.CostEstimate(flops=flops, transcendentals=2 * B, bytes_accessed=bytes_accessed)

    # Scoped-VMEM budget sized to the real working set (v5e/v6e scoped defaults are only
    # 16/32 MiB despite larger physical VMEM): resident operands + f32 intermediates, 2x headroom.
    work = (bytes_accessed
            + 4 * B * (F + 2 * M)                     # g (pre-cast f32) + h + fc2 temps
            + 4 * (2 * B) * (D_IN + 2 * D))           # embed activations
    vmem_limit = int(min(64 * 2 ** 20, max(32 * 2 ** 20, 2 * work + (4 << 20))))

    # Gridless: at these sizes everything fits VMEM and a grid only adds ~0.35us/step overhead.
    # Scaling path when D^2*M grows (esp. v7x's 64 MiB VMEM / v5e's 16 MiB scoped default):
    #   - grid over M with w1_full blocked (F, tile_m) -- contiguous tiles, 'parallel' axis;
    #   - or over the K=F reduction with a (B, M) f32 accumulator in VMEM scratch ('arbitrary',
    #     pl.Buffered(2-3), init/finalize via pl.when);
    #   - add a leading 'parallel' batch axis for the v7x megacore once B grows;
    #   - on v5e, amortize the weight DMA by batching many (x1, x2) pairs per call.
    vmem = lambda: pl.BlockSpec(memory_space=pltpu.MemorySpace.VMEM)
    out = pl.pallas_call(
        ldawccn_kernel,
        out_shape=jax.ShapeDtypeStruct((B, out_pad), jnp.float32),
        in_specs=[vmem() for _ in inputs],
        out_specs=vmem(),
        compiler_params=pltpu.CompilerParams(vmem_limit_bytes=vmem_limit),
        cost_estimate=cost,
    )(*inputs)
    return out[:, :1]


# --------------------------------------------------------------------------------------
# Pure-JAX reference (mirrors the PyTorch forward, input_process='sam_compress')
# --------------------------------------------------------------------------------------
def ldawccn_reference(x1, x2, params):
    lda_w, lda_b, wccn_w, wccn_b, w1, b1, w2, b2 = params

    def emb(x):
        z = x @ lda_w.T + lda_b
        z = z @ wccn_w.T + wccn_b
        n = jnp.sqrt(jnp.sum(z * z, axis=1, keepdims=True))
        return z / jnp.maximum(n, 1e-12)

    a, b = emb(x1), emb(x2)
    Bn, D = a.shape
    dif = a[:, :, None] * b[:, None, :] + b[:, :, None] * a[:, None, :]
    sam = a[:, :, None] * a[:, None, :] + b[:, :, None] * b[:, None, :]
    iu0, iu1 = np.triu_indices(D)                  # same row-major order as torch.triu_indices
    tmp = jnp.concatenate([dif.reshape(Bn, -1), sam[:, iu0, iu1], a + b], axis=1)
    h = jnp.maximum(tmp @ w1.T + b1, 0.0)          # Dropout == identity at inference
    return h @ w2.T + b2


def make_params(key, d_in, d_lda, mid):
    ks = jax.random.split(key, 8)
    f_in = d_lda * d_lda + d_lda * (d_lda + 1) // 2 + d_lda      # 'sam_compress' width
    # "kaldi" matrices (deterministic synthetic stand-ins)
    lda_w = 0.1 * jax.random.normal(ks[0], (d_lda, d_in), jnp.float32)
    lda_b = 0.1 * jax.random.normal(ks[1], (d_lda,), jnp.float32)
    wccn_w = 0.1 * jax.random.normal(ks[2], (d_lda, d_lda), jnp.float32)
    wccn_b = 0.1 * jax.random.normal(ks[3], (d_lda,), jnp.float32)
    # BasicNet: kaiming-uniform fc weights (a=0), torch-default uniform biases
    bnd1 = float(np.sqrt(6.0 / f_in))
    w1 = jax.random.uniform(ks[4], (mid, f_in), jnp.float32, -bnd1, bnd1)
    b1 = jax.random.uniform(ks[5], (mid,), jnp.float32, -1.0 / np.sqrt(f_in), 1.0 / np.sqrt(f_in))
    bnd2 = float(np.sqrt(6.0 / mid))
    w2 = jax.random.uniform(ks[6], (1, mid), jnp.float32, -bnd2, bnd2)
    b2 = jax.random.uniform(ks[7], (1,), jnp.float32, -1.0 / np.sqrt(mid), 1.0 / np.sqrt(mid))
    return (lda_w, lda_b, wccn_w, wccn_b, w1, b1, w2, b2)


if __name__ == "__main__":
    B, D_IN, D_LDA, MID = 2, 32, 16, 128   # kaldi_lda ~ (16, 33) incl. bias col; small mid_feature

    key = jax.random.PRNGKey(0)
    kx1, kx2, kp = jax.random.split(key, 3)
    x1 = jax.random.normal(kx1, (B, D_IN), jnp.float32)
    x2 = jax.random.normal(kx2, (B, D_IN), jnp.float32)
    params = make_params(kp, D_IN, D_LDA, MID)

    prep = prepare_params(params)          # hoisted: once per model, not per forward call
    fwd = jax.jit(ldawccn_forward)

    out = jax.block_until_ready(fwd(x1, x2, prep))
    ref = jax.block_until_ready(ldawccn_reference(x1, x2, params))

    assert out.shape == (B, 1) and out.dtype == jnp.float32
    # bf16 weights AND bf16 activation feeds (embed + fc1 GEMM) vs a pure-f32 reference.
    np.testing.assert_allclose(np.asarray(out), np.asarray(ref), rtol=3e-2, atol=3e-2)
    print("KERNEL_OK")
</pallas_src>

<mosaic_0001>
module attributes {stable_mosaic.version = 11 : i64} {
  func.func @ldawccn_kernel(%arg0: memref<4x32xbf16, #tpu.memory_space<vmem>>, %arg1: memref<32x16xbf16, #tpu.memory_space<vmem>>, %arg2: memref<1x16xf32, #tpu.memory_space<vmem>>, %arg3: memref<16x16xbf16, #tpu.memory_space<vmem>>, %arg4: memref<1x16xf32, #tpu.memory_space<vmem>>, %arg5: memref<528x128xbf16, #tpu.memory_space<vmem>>, %arg6: memref<1x128xf32, #tpu.memory_space<vmem>>, %arg7: memref<1x128xbf16, #tpu.memory_space<vmem>>, %arg8: memref<1x1xf32, #tpu.memory_space<vmem>>, %arg9: memref<2x128xf32, #tpu.memory_space<vmem>>) attributes {dimension_semantics = [], scalar_prefetch = 0 : i64, scratch_operands = 0 : i64, tpu.core_type = #tpu.core_type<tc>} {
    %c0 = arith.constant 0 : index
    %c0_0 = arith.constant 0 : index
    %0 = vector.load %arg0[%c0, %c0_0] : memref<4x32xbf16, #tpu.memory_space<vmem>>, vector<4x32xbf16>
    %c0_1 = arith.constant 0 : index
    %c0_2 = arith.constant 0 : index
    %1 = vector.load %arg1[%c0_1, %c0_2] : memref<32x16xbf16, #tpu.memory_space<vmem>>, vector<32x16xbf16>
    %cst = arith.constant dense<0.000000e+00> : vector<4x16xf32>
    %2 = tpu.matmul %0, %1, %cst {dimension_numbers = #tpu.dot_dimension_numbers<[1], [0], [0], [1], [0, 0, 1, 1], [], []>} : vector<4x32xbf16>, vector<32x16xbf16>, vector<4x16xf32> -> vector<4x16xf32>
    %c0_3 = arith.constant 0 : index
    %c0_4 = arith.constant 0 : index
    %3 = vector.load %arg2[%c0_3, %c0_4] : memref<1x16xf32, #tpu.memory_space<vmem>>, vector<1x16xf32>
    %4 = vector.broadcast %3 : vector<1x16xf32> to vector<4x16xf32>
    %5 = arith.addf %2, %4 : vector<4x16xf32>
    %6 = arith.truncf %5 : vector<4x16xf32> to vector<4x16xbf16>
    %c0_5 = arith.constant 0 : index
    %c0_6 = arith.constant 0 : index
    %7 = vector.load %arg3[%c0_5, %c0_6] : memref<16x16xbf16, #tpu.memory_space<vmem>>, vector<16x16xbf16>
    %cst_7 = arith.constant dense<0.000000e+00> : vector<4x16xf32>
    %8 = tpu.matmul %6, %7, %cst_7 {dimension_numbers = #tpu.dot_dimension_numbers<[1], [0], [0], [1], [0, 0, 1, 1], [], []>} : vector<4x16xbf16>, vector<16x16xbf16>, vector<4x16xf32> -> vector<4x16xf32>
    %c0_8 = arith.constant 0 : index
    %c0_9 = arith.constant 0 : index
    %9 = vector.load %arg4[%c0_8, %c0_9] : memref<1x16xf32, #tpu.memory_space<vmem>>, vector<1x16xf32>
    %10 = vector.broadcast %9 : vector<1x16xf32> to vector<4x16xf32>
    %11 = arith.addf %8, %10 : vector<4x16xf32>
    %12 = arith.mulf %11, %11 : vector<4x16xf32>
    %cst_10 = arith.constant dense<0.000000e+00> : vector<4xf32>
    %13 = vector.multi_reduction <add>, %12, %cst_10 [1] : vector<4x16xf32> to vector<4xf32>
    %14 = vector.shape_cast %13 : vector<4xf32> to vector<4x1xf32>
    %cst_11 = arith.constant 1.000000e-24 : f32
    %15 = vector.broadcast %cst_11 : f32 to vector<4x1xf32>
    %16 = arith.maximumf %14, %15 : vector<4x1xf32>
    %17 = math.rsqrt %16 : vector<4x1xf32>
    %18 = vector.broadcast %17 : vector<4x1xf32> to vector<4x16xf32>
    %19 = arith.mulf %11, %18 : vector<4x16xf32>
    %20 = vector.extract_strided_slice %19 {offsets = [0, 0], sizes = [2, 16], strides = [1, 1]} : vector<4x16xf32> to vector<2x16xf32>
    %21 = vector.extract_strided_slice %19 {offsets = [2, 0], sizes = [2, 16], strides = [1, 1]} : vector<4x16xf32> to vector<2x16xf32>
    %22 = vector.extract_strided_slice %20 {offsets = [0, 0], sizes = [2, 1], strides = [1, 1]} : vector<2x16xf32> to vector<2x1xf32>
    %23 = vector.broadcast %22 : vector<2x1xf32> to vector<2x16xf32>
    %24 = arith.mulf %23, %21 : vector<2x16xf32>
    %25 = vector.extract_strided_slice %21 {offsets = [0, 0], sizes = [2, 1], strides = [1, 1]} : vector<2x16xf32> to vector<2x1xf32>
    %26 = vector.broadcast %25 : vector<2x1xf32> to vector<2x16xf32>
    %27 = arith.mulf %26, %20 : vector<2x16xf32>
    %28 = arith.addf %24, %27 : vector<2x16xf32>
    %29 = vector.extract_strided_slice %20 {offsets = [0, 1], sizes = [2, 1], strides = [1, 1]} : vector<2x16xf32> to vector<2x1xf32>
    %30 = vector.broadcast %29 : vector<2x1xf32> to vector<2x16xf32>
    %31 = arith.mulf %30, %21 : vector<2x16xf32>
    %32 = vector.extract_strided_slice %21 {offsets = [0, 1], sizes = [2, 1], strides = [1, 1]} : vector<2x16xf32> to vector<2x1xf32>
    %33 = vector.broadcast %32 : vector<2x1xf32> to vector<2x16xf32>
    %34 = arith.mulf %33, %20 : vector<2x16xf32>
    %35 = arith.addf %31, %34 : vector<2x16xf32>
    %36 = vector.extract_strided_slice %20 {offsets = [0, 2], sizes = [2, 1], strides = [1, 1]} : vector<2x16xf32> to vector<2x1xf32>
    %37 = vector.broadcast %36 : vector<2x1xf32> to vector<2x16xf32>
    %38 = arith.mulf %37, %21 : vector<2x16xf32>
    %39 = vector.extract_strided_slice %21 {offsets = [0, 2], sizes = [2, 1], strides = [1, 1]} : vector<2x16xf32> to vector<2x1xf32>
    %40 = vector.broadcast %39 : vector<2x1xf32> to vector<2x16xf32>
    %41 = arith.mulf %40, %20 : vector<2x16xf32>
    %42 = arith.addf %38, %41 : vector<2x16xf32>
    %43 = vector.extract_strided_slice %20 {offsets = [0, 3], sizes = [2, 1], strides = [1, 1]} : vector<2x16xf32> to vector<2x1xf32>
    %44 = vector.broadcast %43 : vector<2x1xf32> to vector<2x16xf32>
    %45 = arith.mulf %44, %21 : vector<2x16xf32>
    %46 = vector.extract_strided_slice %21 {offsets = [0, 3], sizes = [2, 1], strides = [1, 1]} : vector<2x16xf32> to vector<2x1xf32>
    %47 = vector.broadcast %46 : vector<2x1xf32> to vector<2x16xf32>
    %48 = arith.mulf %47, %20 : vector<2x16xf32>
    %49 = arith.addf %45, %48 : vector<2x16xf32>
    %50 = vector.extract_strided_slice %20 {offsets = [0, 4], sizes = [2, 1], strides = [1, 1]} : vector<2x16xf32> to vector<2x1xf32>
    %51 = vector.broadcast %50 : vector<2x1xf32> to vector<2x16xf32>
    %52 = arith.mulf %51, %21 : vector<2x16xf32>
    %53 = vector.extract_strided_slice %21 {offsets = [0, 4], sizes = [2, 1], strides = [1, 1]} : vector<2x16xf32> to vector<2x1xf32>
    %54 = vector.broadcast %53 : vector<2x1xf32> to vector<2x16xf32>
    %55 = arith.mulf %54, %20 : vector<2x16xf32>
    %56 = arith.addf %52, %55 : vector<2x16xf32>
    %57 = vector.extract_strided_slice %20 {offsets = [0, 5], sizes = [2, 1], strides = [1, 1]} : vector<2x16xf32> to vector<2x1xf32>
    %58 = vector.broadcast %57 : vector<2x1xf32> to vector<2x16xf32>
    %59 = arith.mulf %58, %21 : vector<2x16xf32>
    %60 = vector.extract_strided_slice %21 {offsets = [0, 5], sizes = [2, 1], strides = [1, 1]} : vector<2x16xf32> to vector<2x1xf32>
    %61 = vector.broadcast %60 : vector<2x1xf32> to vector<2x16xf32>
    %62 = arith.mulf %61, %20 : vector<2x16xf32>
    %63 = arith.addf %59, %62 : vector<2x16xf32>
    %64 = vector.extract_strided_slice %20 {offsets = [0, 6], sizes = [2, 1], strides = [1, 1]} : vector<2x16xf32> to vector<2x1xf32>
    %65 = vector.broadcast %64 : vector<2x1xf32> to vector<2x16xf32>
    %66 = arith.mulf %65, %21 : vector<2x16xf32>
    %67 = vector.extract_strided_slice %21 {offsets = [0, 6], sizes = [2, 1], strides = [1, 1]} : vector<2x16xf32> to vector<2x1xf32>
    %68 = vector.broadcast %67 : vector<2x1xf32> to vector<2x16xf32>
    %69 = arith.mulf %68, %20 : vector<2x16xf32>
    %70 = arith.addf %66, %69 : vector<2x16xf32>
    %71 = vector.extract_strided_slice %20 {offsets = [0, 7], sizes = [2, 1], strides = [1, 1]} : vector<2x16xf32> to vector<2x1xf32>
    %72 = vector.broadcast %71 : vector<2x1xf32> to vector<2x16xf32>
    %73 = arith.mulf %72, %21 : vector<2x16xf32>
    %74 = vector.extract_strided_slice %21 {offsets = [0, 7], sizes = [2, 1], strides = [1, 1]} : vector<2x16xf32> to vector<2x1xf32>
    %75 = vector.broadcast %74 : vector<2x1xf32> to vector<2x16xf32>
    %76 = arith.mulf %75, %20 : vector<2x16xf32>
    %77 = arith.addf %73, %76 : vector<2x16xf32>
    %78 = vector.extract_strided_slice %20 {offsets = [0, 8], sizes = [2, 1], strides = [1, 1]} : vector<2x16xf32> to vector<2x1xf32>
    %79 = vector.broadcast %78 : vector<2x1xf32> to vector<2x16xf32>
    %80 = arith.mulf %79, %21 : vector<2x16xf32>
    %81 = vector.extract_strided_slice %21 {offsets = [0, 8], sizes = [2, 1], strides = [1, 1]} : vector<2x16xf32> to vector<2x1xf32>
    %82 = vector.broadcast %81 : vector<2x1xf32> to vector<2x16xf32>
    %83 = arith.mulf %82, %20 : vector<2x16xf32>
    %84 = arith.addf %80, %83 : vector<2x16xf32>
    %85 = vector.extract_strided_slice %20 {offsets = [0, 9], sizes = [2, 1], strides = [1, 1]} : vector<2x16xf32> to vector<2x1xf32>
    %86 = vector.broadcast %85 : vector<2x1xf32> to vector<2x16xf32>
    %87 = arith.mulf %86, %21 : vector<2x16xf32>
    %88 = vector.extract_strided_slice %21 {offsets = [0, 9], sizes = [2, 1], strides = [1, 1]} : vector<2x16xf32> to vector<2x1xf32>
    %89 = vector.broadcast %88 : vector<2x1xf32> to vector<2x16xf32>
    %90 = arith.mulf %89, %20 : vector<2x16xf32>
    %91 = arith.addf %87, %90 : vector<2x16xf32>
    %92 = vector.extract_strided_slice %20 {offsets = [0, 10], sizes = [2, 1], strides = [1, 1]} : vector<2x16xf32> to vector<2x1xf32>
    %93 = vector.broadcast %92 : vector<2x1xf32> to vector<2x16xf32>
    %94 = arith.mulf %93, %21 : vector<2x16xf32>
    %95 = vector.extract_strided_slice %21 {offsets = [0, 10], sizes = [2, 1], strides = [1, 1]} : vector<2x16xf32> to vector<2x1xf32>
    %96 = vector.broadcast %95 : vector<2x1xf32> to vector<2x16xf32>
    %97 = arith.mulf %96, %20 : vector<2x16xf32>
    %98 = arith.addf %94, %97 : vector<2x16xf32>
    %99 = vector.extract_strided_slice %20 {offsets = [0, 11], sizes = [2, 1], strides = [1, 1]} : vector<2x16xf32> to vector<2x1xf32>
    %100 = vector.broadcast %99 : vector<2x1xf32> to vector<2x16xf32>
    %101 = arith.mulf %100, %21 : vector<2x16xf32>
    %102 = vector.extract_strided_slice %21 {offsets = [0, 11], sizes = [2, 1], strides = [1, 1]} : vector<2x16xf32> to vector<2x1xf32>
    %103 = vector.broadcast %102 : vector<2x1xf32> to vector<2x16xf32>
    %104 = arith.mulf %103, %20 : vector<2x16xf32>
    %105 = arith.addf %101, %104 : vector<2x16xf32>
    %106 = vector.extract_strided_slice %20 {offsets = [0, 12], sizes = [2, 1], strides = [1, 1]} : vector<2x16xf32> to vector<2x1xf32>
    %107 = vector.broadcast %106 : vector<2x1xf32> to vector<2x16xf32>
    %108 = arith.mulf %107, %21 : vector<2x16xf32>
    %109 = vector.extract_strided_slice %21 {offsets = [0, 12], sizes = [2, 1], strides = [1, 1]} : vector<2x16xf32> to vector<2x1xf32>
    %110 = vector.broadcast %109 : vector<2x1xf32> to vector<2x16xf32>
    %111 = arith.mulf %110, %20 : vector<2x16xf32>
    %112 = arith.addf %108, %111 : vector<2x16xf32>
    %113 = vector.extract_strided_slice %20 {offsets = [0, 13], sizes = [2, 1], strides = [1, 1]} : vector<2x16xf32> to vector<2x1xf32>
    %114 = vector.broadcast %113 : vector<2x1xf32> to vector<2x16xf32>
    %115 = arith.mulf %114, %21 : vector<2x16xf32>
    %116 = vector.extract_strided_slice %21 {offsets = [0, 13], sizes = [2, 1], strides = [1, 1]} : vector<2x16xf32> to vector<2x1xf32>
    %117 = vector.broadcast %116 : vector<2x1xf32> to vector<2x16xf32>
    %118 = arith.mulf %117, %20 : vector<2x16xf32>
    %119 = arith.addf %115, %118 : vector<2x16xf32>
    %120 = vector.extract_strided_slice %20 {offsets = [0, 14], sizes = [2, 1], strides = [1, 1]} : vector<2x16xf32> to vector<2x1xf32>
    %121 = vector.broadcast %120 : vector<2x1xf32> to vector<2x16xf32>
    %122 = arith.mulf %121, %21 : vector<2x16xf32>
    %123 = vector.extract_strided_slice %21 {offsets = [0, 14], sizes = [2, 1], strides = [1, 1]} : vector<2x16xf32> to vector<2x1xf32>
    %124 = vector.broadcast %123 : vector<2x1xf32> to vector<2x16xf32>
    %125 = arith.mulf %124, %20 : vector<2x16xf32>
    %126 = arith.addf %122, %125 : vector<2x16xf32>
    %127 = vector.extract_strided_slice %20 {offsets = [0, 15], sizes = [2, 1], strides = [1, 1]} : vector<2x16xf32> to vector<2x1xf32>
    %128 = vector.broadcast %127 : vector<2x1xf32> to vector<2x16xf32>
    %129 = arith.mulf %128, %21 : vector<2x16xf32>
    %130 = vector.extract_strided_slice %21 {offsets = [0, 15], sizes = [2, 1], strides = [1, 1]} : vector<2x16xf32> to vector<2x1xf32>
    %131 = vector.broadcast %130 : vector<2x1xf32> to vector<2x16xf32>
    %132 = arith.mulf %131, %20 : vector<2x16xf32>
    %133 = arith.addf %129, %132 : vector<2x16xf32>
    %134 = vector.extract_strided_slice %20 {offsets = [0, 0], sizes = [2, 1], strides = [1, 1]} : vector<2x16xf32> to vector<2x1xf32>
    %135 = vector.broadcast %134 : vector<2x1xf32> to vector<2x16xf32>
    %136 = arith.mulf %135, %20 : vector<2x16xf32>
    %137 = vector.extract_strided_slice %21 {offsets = [0, 0], sizes = [2, 1], strides = [1, 1]} : vector<2x16xf32> to vector<2x1xf32>
    %138 = vector.broadcast %137 : vector<2x1xf32> to vector<2x16xf32>
    %139 = arith.mulf %138, %21 : vector<2x16xf32>
    %140 = arith.addf %136, %139 : vector<2x16xf32>
    %141 = vector.extract_strided_slice %20 {offsets = [0, 1], sizes = [2, 1], strides = [1, 1]} : vector<2x16xf32> to vector<2x1xf32>
    %142 = vector.broadcast %141 : vector<2x1xf32> to vector<2x16xf32>
    %143 = arith.mulf %142, %20 : vector<2x16xf32>
    %144 = vector.extract_strided_slice %21 {offsets = [0, 1], sizes = [2, 1], strides = [1, 1]} : vector<2x16xf32> to vector<2x1xf32>
    %145 = vector.broadcast %144 : vector<2x1xf32> to vector<2x16xf32>
    %146 = arith.mulf %145, %21 : vector<2x16xf32>
    %147 = arith.addf %143, %146 : vector<2x16xf32>
    %148 = vector.extract_strided_slice %20 {offsets = [0, 2], sizes = [2, 1], strides = [1, 1]} : vector<2x16xf32> to vector<2x1xf32>
    %149 = vector.broadcast %148 : vector<2x1xf32> to vector<2x16xf32>
    %150 = arith.mulf %149, %20 : vector<2x16xf32>
    %151 = vector.extract_strided_slice %21 {offsets = [0, 2], sizes = [2, 1], strides = [1, 1]} : vector<2x16xf32> to vector<2x1xf32>
    %152 = vector.broadcast %151 : vector<2x1xf32> to vector<2x16xf32>
    %153 = arith.mulf %152, %21 : vector<2x16xf32>
    %154 = arith.addf %150, %153 : vector<2x16xf32>
    %155 = vector.extract_strided_slice %20 {offsets = [0, 3], sizes = [2, 1], strides = [1, 1]} : vector<2x16xf32> to vector<2x1xf32>
    %156 = vector.broadcast %155 : vector<2x1xf32> to vector<2x16xf32>
    %157 = arith.mulf %156, %20 : vector<2x16xf32>
    %158 = vector.extract_strided_slice %21 {offsets = [0, 3], sizes = [2, 1], strides = [1, 1]} : vector<2x16xf32> to vector<2x1xf32>
    %159 = vector.broadcast %158 : vector<2x1xf32> to vector<2x16xf32>
    %160 = arith.mulf %159, %21 : vector<2x16xf32>
    %161 = arith.addf %157, %160 : vector<2x16xf32>
    %162 = vector.extract_strided_slice %20 {offsets = [0, 4], sizes = [2, 1], strides = [1, 1]} : vector<2x16xf32> to vector<2x1xf32>
    %163 = vector.broadcast %162 : vector<2x1xf32> to vector<2x16xf32>
    %164 = arith.mulf %163, %20 : vector<2x16xf32>
    %165 = vector.extract_strided_slice %21 {offsets = [0, 4], sizes = [2, 1], strides = [1, 1]} : vector<2x16xf32> to vector<2x1xf32>
    %166 = vector.broadcast %165 : vector<2x1xf32> to vector<2x16xf32>
    %167 = arith.mulf %166, %21 : vector<2x16xf32>
    %168 = arith.addf %164, %167 : vector<2x16xf32>
    %169 = vector.extract_strided_slice %20 {offsets = [0, 5], sizes = [2, 1], strides = [1, 1]} : vector<2x16xf32> to vector<2x1xf32>
    %170 = vector.broadcast %169 : vector<2x1xf32> to vector<2x16xf32>
    %171 = arith.mulf %170, %20 : vector<2x16xf32>
    %172 = vector.extract_strided_slice %21 {offsets = [0, 5], sizes = [2, 1], strides = [1, 1]} : vector<2x16xf32> to vector<2x1xf32>
    %173 = vector.broadcast %172 : vector<2x1xf32> to vector<2x16xf32>
    %174 = arith.mulf %173, %21 : vector<2x16xf32>
    %175 = arith.addf %171, %174 : vector<2x16xf32>
    %176 = vector.extract_strided_slice %20 {offsets = [0, 6], sizes = [2, 1], strides = [1, 1]} : vector<2x16xf32> to vector<2x1xf32>
    %177 = vector.broadcast %176 : vector<2x1xf32> to vector<2x16xf32>
    %178 = arith.mulf %177, %20 : vector<2x16xf32>
    %179 = vector.extract_strided_slice %21 {offsets = [0, 6], sizes = [2, 1], strides = [1, 1]} : vector<2x16xf32> to vector<2x1xf32>
    %180 = vector.broadcast %179 : vector<2x1xf32> to vector<2x16xf32>
    %181 = arith.mulf %180, %21 : vector<2x16xf32>
    %182 = arith.addf %178, %181 : vector<2x16xf32>
    %183 = vector.extract_strided_slice %20 {offsets = [0, 7], sizes = [2, 1], strides = [1, 1]} : vector<2x16xf32> to vector<2x1xf32>
    %184 = vector.broadcast %183 : vector<2x1xf32> to vector<2x16xf32>
    %185 = arith.mulf %184, %20 : vector<2x16xf32>
    %186 = vector.extract_strided_slice %21 {offsets = [0, 7], sizes = [2, 1], strides = [1, 1]} : vector<2x16xf32> to vector<2x1xf32>
    %187 = vector.broadcast %186 : vector<2x1xf32> to vector<2x16xf32>
    %188 = arith.mulf %187, %21 : vector<2x16xf32>
    %189 = arith.addf %185, %188 : vector<2x16xf32>
    %190 = vector.extract_strided_slice %20 {offsets = [0, 8], sizes = [2, 1], strides = [1, 1]} : vector<2x16xf32> to vector<2x1xf32>
    %191 = vector.broadcast %190 : vector<2x1xf32> to vector<2x16xf32>
    %192 = arith.mulf %191, %20 : vector<2x16xf32>
    %193 = vector.extract_strided_slice %21 {offsets = [0, 8], sizes = [2, 1], strides = [1, 1]} : vector<2x16xf32> to vector<2x1xf32>
    %194 = vector.broadcast %193 : vector<2x1xf32> to vector<2x16xf32>
    %195 = arith.mulf %194, %21 : vector<2x16xf32>
    %196 = arith.addf %192, %195 : vector<2x16xf32>
    %197 = vector.extract_strided_slice %20 {offsets = [0, 9], sizes = [2, 1], strides = [1, 1]} : vector<2x16xf32> to vector<2x1xf32>
    %198 = vector.broadcast %197 : vector<2x1xf32> to vector<2x16xf32>
    %199 = arith.mulf %198, %20 : vector<2x16xf32>
    %200 = vector.extract_strided_slice %21 {offsets = [0, 9], sizes = [2, 1], strides = [1, 1]} : vector<2x16xf32> to vector<2x1xf32>
    %201 = vector.broadcast %200 : vector<2x1xf32> to vector<2x16xf32>
    %202 = arith.mulf %201, %21 : vector<2x16xf32>
    %203 = arith.addf %199, %202 : vector<2x16xf32>
    %204 = vector.extract_strided_slice %20 {offsets = [0, 10], sizes = [2, 1], strides = [1, 1]} : vector<2x16xf32> to vector<2x1xf32>
    %205 = vector.broadcast %204 : vector<2x1xf32> to vector<2x16xf32>
    %206 = arith.mulf %205, %20 : vector<2x16xf32>
    %207 = vector.extract_strided_slice %21 {offsets = [0, 10], sizes = [2, 1], strides = [1, 1]} : vector<2x16xf32> to vector<2x1xf32>
    %208 = vector.broadcast %207 : vector<2x1xf32> to vector<2x16xf32>
    %209 = arith.mulf %208, %21 : vector<2x16xf32>
    %210 = arith.addf %206, %209 : vector<2x16xf32>
    %211 = vector.extract_strided_slice %20 {offsets = [0, 11], sizes = [2, 1], strides = [1, 1]} : vector<2x16xf32> to vector<2x1xf32>
    %212 = vector.broadcast %211 : vector<2x1xf32> to vector<2x16xf32>
    %213 = arith.mulf %212, %20 : vector<2x16xf32>
    %214 = vector.extract_strided_slice %21 {offsets = [0, 11], sizes = [2, 1], strides = [1, 1]} : vector<2x16xf32> to vector<2x1xf32>
    %215 = vector.broadcast %214 : vector<2x1xf32> to vector<2x16xf32>
    %216 = arith.mulf %215, %21 : vector<2x16xf32>
    %217 = arith.addf %213, %216 : vector<2x16xf32>
    %218 = vector.extract_strided_slice %20 {offsets = [0, 12], sizes = [2, 1], strides = [1, 1]} : vector<2x16xf32> to vector<2x1xf32>
    %219 = vector.broadcast %218 : vector<2x1xf32> to vector<2x16xf32>
    %220 = arith.mulf %219, %20 : vector<2x16xf32>
    %221 = vector.extract_strided_slice %21 {offsets = [0, 12], sizes = [2, 1], strides = [1, 1]} : vector<2x16xf32> to vector<2x1xf32>
    %222 = vector.broadcast %221 : vector<2x1xf32> to vector<2x16xf32>
    %223 = arith.mulf %222, %21 : vector<2x16xf32>
    %224 = arith.addf %220, %223 : vector<2x16xf32>
    %225 = vector.extract_strided_slice %20 {offsets = [0, 13], sizes = [2, 1], strides = [1, 1]} : vector<2x16xf32> to vector<2x1xf32>
    %226 = vector.broadcast %225 : vector<2x1xf32> to vector<2x16xf32>
    %227 = arith.mulf %226, %20 : vector<2x16xf32>
    %228 = vector.extract_strided_slice %21 {offsets = [0, 13], sizes = [2, 1], strides = [1, 1]} : vector<2x16xf32> to vector<2x1xf32>
    %229 = vector.broadcast %228 : vector<2x1xf32> to vector<2x16xf32>
    %230 = arith.mulf %229, %21 : vector<2x16xf32>
    %231 = arith.addf %227, %230 : vector<2x16xf32>
    %232 = vector.extract_strided_slice %20 {offsets = [0, 14], sizes = [2, 1], strides = [1, 1]} : vector<2x16xf32> to vector<2x1xf32>
    %233 = vector.broadcast %232 : vector<2x1xf32> to vector<2x16xf32>
    %234 = arith.mulf %233, %20 : vector<2x16xf32>
    %235 = vector.extract_strided_slice %21 {offsets = [0, 14], sizes = [2, 1], strides = [1, 1]} : vector<2x16xf32> to vector<2x1xf32>
    %236 = vector.broadcast %235 : vector<2x1xf32> to vector<2x16xf32>
    %237 = arith.mulf %236, %21 : vector<2x16xf32>
    %238 = arith.addf %234, %237 : vector<2x16xf32>
    %239 = vector.extract_strided_slice %20 {offsets = [0, 15], sizes = [2, 1], strides = [1, 1]} : vector<2x16xf32> to vector<2x1xf32>
    %240 = vector.broadcast %239 : vector<2x1xf32> to vector<2x16xf32>
    %241 = arith.mulf %240, %20 : vector<2x16xf32>
    %242 = vector.extract_strided_slice %21 {offsets = [0, 15], sizes = [2, 1], strides = [1, 1]} : vector<2x16xf32> to vector<2x1xf32>
    %243 = vector.broadcast %242 : vector<2x1xf32> to vector<2x16xf32>
    %244 = arith.mulf %243, %21 : vector<2x16xf32>
    %245 = arith.addf %241, %244 : vector<2x16xf32>
    %246 = arith.addf %20, %21 : vector<2x16xf32>
    %247 = tpu.concatenate %28, %35, %42, %49, %56, %63, %70, %77, %84, %91, %98, %105, %112, %119, %126, %133 in 1 : vector<2x16xf32>, vector<2x16xf32>, vector<2x16xf32>, vector<2x16xf32>, vector<2x16xf32>, vector<2x16xf32>, vector<2x16xf32>, vector<2x16xf32>, vector<2x16xf32>, vector<2x16xf32>, vector<2x16xf32>, vector<2x16xf32>, vector<2x16xf32>, vector<2x16xf32>, vector<2x16xf32>, vector<2x16xf32> -> vector<2x256xf32>
    %248 = tpu.concatenate %140, %147, %154, %161, %168, %175, %182, %189, %196, %203, %210, %217, %224, %231, %238, %245 in 1 : vector<2x16xf32>, vector<2x16xf32>, vector<2x16xf32>, vector<2x16xf32>, vector<2x16xf32>, vector<2x16xf32>, vector<2x16xf32>, vector<2x16xf32>, vector<2x16xf32>, vector<2x16xf32>, vector<2x16xf32>, vector<2x16xf32>, vector<2x16xf32>, vector<2x16xf32>, vector<2x16xf32>, vector<2x16xf32> -> vector<2x256xf32>
    %249 = tpu.concatenate %247, %248, %246 in 1 : vector<2x256xf32>, vector<2x256xf32>, vector<2x16xf32> -> vector<2x528xf32>
    %250 = arith.truncf %249 : vector<2x528xf32> to vector<2x528xbf16>
    %c0_12 = arith.constant 0 : index
    %c0_13 = arith.constant 0 : index
    %251 = vector.load %arg5[%c0_12, %c0_13] : memref<528x128xbf16, #tpu.memory_space<vmem>>, vector<528x128xbf16>
    %cst_14 = arith.constant dense<0.000000e+00> : vector<2x128xf32>
    %252 = tpu.matmul %250, %251, %cst_14 {dimension_numbers = #tpu.dot_dimension_numbers<[1], [0], [0], [1], [0, 0, 1, 1], [], []>} : vector<2x528xbf16>, vector<528x128xbf16>, vector<2x128xf32> -> vector<2x128xf32>
    %c0_15 = arith.constant 0 : index
    %c0_16 = arith.constant 0 : index
    %253 = vector.load %arg6[%c0_15, %c0_16] : memref<1x128xf32, #tpu.memory_space<vmem>>, vector<1x128xf32>
    %254 = vector.broadcast %253 : vector<1x128xf32> to vector<2x128xf32>
    %255 = arith.addf %252, %254 : vector<2x128xf32>
    %cst_17 = arith.constant 0.000000e+00 : f32
    %256 = vector.broadcast %cst_17 : f32 to vector<2x128xf32>
    %257 = arith.maximumf %255, %256 : vector<2x128xf32>
    %c0_18 = arith.constant 0 : index
    %c0_19 = arith.constant 0 : index
    %258 = vector.load %arg7[%c0_18, %c0_19] : memref<1x128xbf16, #tpu.memory_space<vmem>>, vector<1x128xbf16>
    %259 = arith.extf %258 : vector<1x128xbf16> to vector<1x128xf32>
    %260 = vector.broadcast %259 : vector<1x128xf32> to vector<2x128xf32>
    %261 = arith.mulf %257, %260 : vector<2x128xf32>
    %cst_20 = arith.constant dense<0.000000e+00> : vector<2xf32>
    %262 = vector.multi_reduction <add>, %261, %cst_20 [1] : vector<2x128xf32> to vector<2xf32>
    %263 = vector.shape_cast %262 : vector<2xf32> to vector<2x1xf32>
    %c0_21 = arith.constant 0 : index
    %c0_22 = arith.constant 0 : index
    %264 = vector.load %arg8[%c0_21, %c0_22] : memref<1x1xf32, #tpu.memory_space<vmem>>, vector<1x1xf32>
    %265 = vector.broadcast %264 : vector<1x1xf32> to vector<2x1xf32>
    %266 = arith.addf %263, %265 : vector<2x1xf32>
    %267 = vector.shape_cast %266 : vector<2x1xf32> to vector<2x1xf32>
    %268 = vector.broadcast %267 : vector<2x1xf32> to vector<2x128xf32>
    %c0_23 = arith.constant 0 : index
    %c0_24 = arith.constant 0 : index
    %269 = vector.load %arg9[%c0_23, %c0_24] : memref<2x128xf32, #tpu.memory_space<vmem>>, vector<2x128xf32>
    tpu.vector_store %arg9[%c0_23, %c0_24], %268 {strides = array<i32>} : memref<2x128xf32, #tpu.memory_space<vmem>>, vector<2x128xf32>,
    return
  }
}

</mosaic_0001>

<llo_original>
// kernel: ldawccn_forward.1
$region0: #{ldawccn_forward.1}
  #allocation0 [shape = 'u32[]', space=smem, size = 0x4, offset = 0x4, fixed_abs, tag = 'smem constant byte address 0x4 - core index']
  #allocation1 [shape = 'u32[144,128]{1,0:T(1,128)}', space=vmem, size = 0x12000, scoped, tag = 'internal scratch']
  #allocation2 [shape = 'f32[1,1]{1,0:T(1,128)S(1)}', space=vmem, size = 0x200, scoped, tag = 'scoped memory for ldawccn_forward.1']
  %s0 = inlined_call_operand.vmem [shape: bf16[4,32], index: 0, kind: input, shape index: {}]
  %s1 = inlined_call_operand.vmem [shape: bf16[32,16], index: 1, kind: input, shape index: {}]
  %s2 = inlined_call_operand.vmem [shape: f32[1,16], index: 2, kind: input, shape index: {}]
  %s3 = inlined_call_operand.vmem [shape: bf16[16,16], index: 3, kind: input, shape index: {}]
  %s4 = inlined_call_operand.vmem [shape: f32[1,16], index: 4, kind: input, shape index: {}]
  %s5 = inlined_call_operand.hbm [shape: bf16[528,128], index: 5, kind: input, shape index: {}]
  %s6 = inlined_call_operand.vmem [shape: f32[1,128], index: 6, kind: input, shape index: {}]
  %s7 = inlined_call_operand.vmem [shape: bf16[1,128], index: 7, kind: input, shape index: {}]
  %s8 = inlined_call_operand.<no memory space> [shape: f32[1,1], index: 8, kind: input, shape index: {}]
  %s9 = inlined_call_operand.vmem [shape: f32[2,128], index: 9, kind: output, shape index: {}]
  %s10 = sld [smem:[#allocation0]]
  $region50: #{ldawccn_forward.1} parent=0
    _
  %s12 = ssub.s32 1, %s10
  %s13 = scalar_select 0, %s12, %s10
  %v14 = vstv %s8
  %15 = vst [vmem:[#allocation2] sm:$0x1] %v14
  $region1: #{ldawccn_forward.1} parent=0
    #allocation3 [shape = 'u8[135168]{0}', space=vmem, size = 0x21000, scoped, tag = 'input window, operand 5, single buffered']
    #allocation4 [shape = 's32[1]{0}', space=sflag, size = 0x4, scoped, tag = 'scoped memory for ldawccn_forward.1']
    %16 = vsyncpa [#allocation4], 0
    // Predicated region
    $region2: #{ldawccn_forward.1} parent=1 // pred_check
      _
    $region3: #{ldawccn_forward.1} parent=1 // pred_check_branch
      %18 = sbr.rel (0) target = $region5
    $region4: #{ldawccn_forward.1} parent=1 // pred_region
      _
    $region5: #{ldawccn_forward.1} parent=1 // pred_fallthru
      _
    // Predicated region
    $region6: #{ldawccn_forward.1} parent=1 // pred_check
      _
    $region7: #{ldawccn_forward.1} parent=1 // pred_check_branch
      %20 = sbr.rel (0) target = $region9
    $region8: #{ldawccn_forward.1} parent=1 // pred_region
      _
    $region9: #{ldawccn_forward.1} parent=1 // pred_fallthru
      _
    // Predicated region
    $region10: #{ldawccn_forward.1} parent=1 // pred_check
      _
    $region11: #{ldawccn_forward.1} parent=1 // pred_check_branch
      %22 = sbr.rel (0) target = $region13
    $region12: #{ldawccn_forward.1} parent=1 // pred_region
      _
    $region13: #{ldawccn_forward.1} parent=1 // pred_fallthru
      _
    // Predicated region
    $region14: #{ldawccn_forward.1} parent=1 // pred_check
      _
    $region15: #{ldawccn_forward.1} parent=1 // pred_check_branch
      %24 = sbr.rel (0) target = $region17
    $region16: #{ldawccn_forward.1} parent=1 // pred_region
      _
    $region17: #{ldawccn_forward.1} parent=1 // pred_fallthru
      _
    // Predicated region
    $region18: #{ldawccn_forward.1} parent=1 // pred_check
      _
    $region19: #{ldawccn_forward.1} parent=1 // pred_check_branch
      %26 = sbr.rel (0) target = $region21
    $region20: #{ldawccn_forward.1} parent=1 // pred_region
      _
    $region21: #{ldawccn_forward.1} parent=1 // pred_fallthru
      _
    // Predicated region
    $region22: #{ldawccn_forward.1} parent=1 // pred_check
      _
    $region23: #{ldawccn_forward.1} parent=1 // pred_check_branch
      %28 = sbr.rel (0) target = $region25
    $region24: #{ldawccn_forward.1} parent=1 // pred_region
      %s30 = ssub.s32 4224, 4224
      %31 = vsyncadd [#allocation4], %s30
      %s32 = sshll.u32 [#allocation3], 4
      %s33 = int_to_ptr.vmem [resolvable:$true] %s32
      %38 = dma.hbm_to_vmem [thread:$0]  %s5, 4224, %s33, [#allocation4], 64, 64, 4
    $region25: #{ldawccn_forward.1} parent=1 // pred_fallthru
      _
    // Predicated region
    $region26: #{ldawccn_forward.1} parent=1 // pred_check
      _
    $region27: #{ldawccn_forward.1} parent=1 // pred_check_branch
      %40 = sbr.rel (0) target = $region29
    $region28: #{ldawccn_forward.1} parent=1 // pred_region
      _
    $region29: #{ldawccn_forward.1} parent=1 // pred_fallthru
      _
    // Predicated region
    $region30: #{ldawccn_forward.1} parent=1 // pred_check
      _
    $region31: #{ldawccn_forward.1} parent=1 // pred_check_branch
      %42 = sbr.rel (0) target = $region33
    $region32: #{ldawccn_forward.1} parent=1 // pred_region
      _
    $region33: #{ldawccn_forward.1} parent=1 // pred_fallthru
      _
    // Predicated region
    $region34: #{ldawccn_forward.1} parent=1 // pred_check
      _
    $region35: #{ldawccn_forward.1} parent=1 // pred_check_branch
      %44 = sbr.rel (0) target = $region37
    $region36: #{ldawccn_forward.1} parent=1 // pred_region
      _
    $region37: #{ldawccn_forward.1} parent=1 // pred_fallthru
      _
    // Predicated region
    $region38: #{ldawccn_forward.1} parent=1 // pred_check
      _
    $region39: #{ldawccn_forward.1} parent=1 // pred_check_branch
      %46 = sbr.rel (0) target = $region41
    $region40: #{ldawccn_forward.1} parent=1 // pred_region
      %47 = dma.done [#allocation4], 4224
    $region41: #{ldawccn_forward.1} parent=1 // pred_fallthru
      _
    %v49 = vld [vmem:[%s0] sm:$0x3]
    %v50 = vld [vmem:[%s1] sm:$0xf]
    %v51 = vld [vmem:[%s1 + $0x4] sm:$0xf]
    %v52 = vld [vmem:[%s1 + $0x8] sm:$0xf]
    %v53 = vld [vmem:[%s1 + $0xc] sm:$0xf]
    %v54 = vld [vmem:[%s2] sm:$0x1]
    %v56 = vlaneseq
    %v57 = vshrl.u32 %v56, 7
    %v58 = vsub.s32 0, %v57
    %v59 = vrot.slane %v54, %v58
    %v65 = vunpack.c.l.b16 %v50
    %v66 = vunpack.c.l.b16 %v51
    %v67 = vunpack.c.l.b16 %v52
    %v68 = vunpack.c.l.b16 %v53
    %v69 = vpack.c.b16 %v66, %v65
    %v70 = vpack.c.b16 %v68, %v67
    %vm73 = vcmask 261120
    %v75 = vsel %vm73, %v49, 0
    %77 = vmatprep.subr.bf16.mxu0 0
    %78 = vmatpush1.bf16.msra.mxu0 0
    %79 = vmatprep.subr.bf16.mxu0 0
    %80 = vmatpush1.bf16.msra.mxu0 0
    %81 = vmatprep.subr.bf16.mxu0 0
    %82 = vmatpush1.bf16.msra.mxu0 0
    %83 = vmatprep.subr.bf16.mxu0 0
    %84 = vmatpush1.bf16.msra.mxu0 0
    %85 = vmatprep.subr.bf16.mxu0 0
    %86 = vmatpush1.bf16.msra.mxu0 0
    %87 = vmatprep.subr.bf16.mxu0 0
    %88 = vmatpush1.bf16.msra.mxu0 0
    %89 = vmatprep.subr.bf16.mxu0 0
    %90 = vmatpush1.bf16.msra.mxu0 %v70
    %91 = vmatprep.subr.bf16.mxu0 0
    %92 = vmatpush1.bf16.msra.mxu0 %v69
    %93 = vmatprep.subr.bf16.mxu0 0
    %94 = vmatpush2.bf16.msra.mxu0 0
    %95 = vmatprep.subr.bf16.mxu0 0
    %96 = vmatpush2.bf16.msra.mxu0 0
    %97 = vmatprep.subr.bf16.mxu0 0
    %98 = vmatpush2.bf16.msra.mxu0 0
    %99 = vmatprep.subr.bf16.mxu0 0
    %100 = vmatpush2.bf16.msra.mxu0 0
    %101 = vmatprep.subr.bf16.mxu0 0
    %102 = vmatpush2.bf16.msra.mxu0 0
    %103 = vmatprep.subr.bf16.mxu0 0
    %104 = vmatpush2.bf16.msra.mxu0 0
    %105 = vmatprep.subr.bf16.mxu0 0
    %106 = vmatpush2.bf16.msra.mxu0 0
    %107 = vmatprep.subr.bf16.mxu0 0
    %108 = vmatpush2.bf16.msra.mxu0 0
    %109 = vmatprep.mubr.bf16.mxu0 0
    %110 = vmatmul.mubr.bf16.gmra.mxu0 %v75
    %v111 = vpop.f32.mrf.mxu0
    %v112 = vadd.f32 %v59, %v111
    %v113 = vpop.f32.mrf.mxu0
    %v114 = vpop.f32.mrf.mxu0
    %v115 = vpop.f32.mrf.mxu0
    %116 = vdwg.mxu0
    %v117 = vpack.c.bf16 %v112, %v112
    %v118 = vld [vmem:[%s3] sm:$0xf]
    %v119 = vld [vmem:[%s3 + $0x4] sm:$0xf]
    %v120 = vld [vmem:[%s4] sm:$0x1]
    %v122 = vlaneseq
    %v123 = vshrl.u32 %v122, 7
    %v124 = vsub.s32 0, %v123
    %v125 = vrot.slane %v120, %v124
    %v129 = vunpack.c.l.b16 %v118
    %v130 = vunpack.c.l.b16 %v119
    %v131 = vpack.c.b16 %v130, %v129
    %vm133 = vcmask 130048
    %v135 = vsel %vm133, %v117, 0
    %137 = vmatprep.subr.bf16.mxu0 0
    %138 = vmatpush1.bf16.msra.mxu0 0
    %139 = vmatprep.subr.bf16.mxu0 0
    %140 = vmatpush1.bf16.msra.mxu0 0
    %141 = vmatprep.subr.bf16.mxu0 0
    %142 = vmatpush1.bf16.msra.mxu0 0
    %143 = vmatprep.subr.bf16.mxu0 0
    %144 = vmatpush1.bf16.msra.mxu0 0
    %145 = vmatprep.subr.bf16.mxu0 0
    %146 = vmatpush1.bf16.msra.mxu0 0
    %147 = vmatprep.subr.bf16.mxu0 0
    %148 = vmatpush1.bf16.msra.mxu0 0
    %149 = vmatprep.subr.bf16.mxu0 0
    %150 = vmatpush1.bf16.msra.mxu0 0
    %151 = vmatprep.subr.bf16.mxu0 0
    %152 = vmatpush1.bf16.msra.mxu0 %v131
    %153 = vmatprep.subr.bf16.mxu0 0
    %154 = vmatpush2.bf16.msra.mxu0 0
    %155 = vmatprep.subr.bf16.mxu0 0
    %156 = vmatpush2.bf16.msra.mxu0 0
    %157 = vmatprep.subr.bf16.mxu0 0
    %158 = vmatpush2.bf16.msra.mxu0 0
    %159 = vmatprep.subr.bf16.mxu0 0
    %160 = vmatpush2.bf16.msra.mxu0 0
    %161 = vmatprep.subr.bf16.mxu0 0
    %162 = vmatpush2.bf16.msra.mxu0 0
    %163 = vmatprep.subr.bf16.mxu0 0
    %164 = vmatpush2.bf16.msra.mxu0 0
    %165 = vmatprep.subr.bf16.mxu0 0
    %166 = vmatpush2.bf16.msra.mxu0 0
    %167 = vmatprep.subr.bf16.mxu0 0
    %168 = vmatpush2.bf16.msra.mxu0 0
    %169 = vmatprep.mubr.bf16.mxu0 0
    %170 = vmatmul.mubr.bf16.gmra.mxu0 %v135
    %v171 = vpop.f32.mrf.mxu0
    %v172 = vadd.f32 %v125, %v171
    %v173 = vpop.f32.mrf.mxu0
    %v174 = vpop.f32.mrf.mxu0
    %v175 = vpop.f32.mrf.mxu0
    %176 = vdwg.mxu0
    %v177 = vmul.f32 %v172, %v172
    %vm178 = vcmask 125952
    %v179 = vsel %vm178, %v177, 0.0
    %180 = vadd.xlane.f32.xlu0 %v179
    %v181 = vpop.xlane.xlu0 %180
    %v182 = vmax.f32 %v181, 1e-24
    %v183 = vrsqrt.pop %v182
    %v184 = vmul.f32 %v172, %v183
    %186 = vset.pattern.permute.xlu0 0
    %187 = vperm.xlu0 %186, %v184
    %v188 = vpop.permute.xlu0 %187
    %v190 = vrot.slane %v184, 2
    %v192 = vmul.f32 %v188, %v190
    %v193 = vrot.slane %v184, 6
    %v195 = vmul.f32 %v188, %v193
    %v197 = vrot.slane %v195, 2
    %v199 = vadd.f32 %v192, %v197
    %200 = vset.pattern.permute.xlu0 1
    %201 = vperm.xlu0 %200, %v184
    %v202 = vpop.permute.xlu0 %201
    %v204 = vmul.f32 %v202, %v190
    %v205 = vmul.f32 %v202, %v193
    %v207 = vrot.slane %v205, 2
    %v209 = vadd.f32 %v204, %v207
    %210 = vset.pattern.permute.xlu0 2
    %211 = vperm.xlu0 %210, %v184
    %v212 = vpop.permute.xlu0 %211
    %v214 = vmul.f32 %v212, %v190
    %v215 = vmul.f32 %v212, %v193
    %v217 = vrot.slane %v215, 2
    %v219 = vadd.f32 %v214, %v217
    %220 = vset.pattern.permute.xlu0 3
    %221 = vperm.xlu0 %220, %v184
    %v222 = vpop.permute.xlu0 %221
    %v224 = vmul.f32 %v222, %v190
    %v225 = vmul.f32 %v222, %v193
    %v227 = vrot.slane %v225, 2
    %v229 = vadd.f32 %v224, %v227
    %230 = vset.pattern.permute.xlu0 4
    %231 = vperm.xlu0 %230, %v184
    %v232 = vpop.permute.xlu0 %231
    %v234 = vmul.f32 %v232, %v190
    %v235 = vmul.f32 %v232, %v193
    %v237 = vrot.slane %v235, 2
    %v239 = vadd.f32 %v234, %v237
    %240 = vset.pattern.permute.xlu0 5
    %241 = vperm.xlu0 %240, %v184
    %v242 = vpop.permute.xlu0 %241
    %v244 = vmul.f32 %v242, %v190
    %v245 = vmul.f32 %v242, %v193
    %v247 = vrot.slane %v245, 2
    %v249 = vadd.f32 %v244, %v247
    %250 = vset.pattern.permute.xlu0 6
    %251 = vperm.xlu0 %250, %v184
    %v252 = vpop.permute.xlu0 %251
    %v254 = vmul.f32 %v252, %v190
    %v255 = vmul.f32 %v252, %v193
    %v257 = vrot.slane %v255, 2
    %v259 = vadd.f32 %v254, %v257
    %260 = vset.pattern.permute.xlu0 7
    %261 = vperm.xlu0 %260, %v184
    %v262 = vpop.permute.xlu0 %261
    %v264 = vmul.f32 %v262, %v190
    %v265 = vmul.f32 %v262, %v193
    %v267 = vrot.slane %v265, 2
    %v269 = vadd.f32 %v264, %v267
    %270 = vset.pattern.permute.xlu0 8
    %271 = vperm.xlu0 %270, %v184
    %v272 = vpop.permute.xlu0 %271
    %v274 = vmul.f32 %v272, %v190
    %v275 = vmul.f32 %v272, %v193
    %v277 = vrot.slane %v275, 2
    %v279 = vadd.f32 %v274, %v277
    %280 = vset.pattern.permute.xlu0 9
    %281 = vperm.xlu0 %280, %v184
    %v282 = vpop.permute.xlu0 %281
    %v284 = vmul.f32 %v282, %v190
    %v285 = vmul.f32 %v282, %v193
    %v287 = vrot.slane %v285, 2
    %v289 = vadd.f32 %v284, %v287
    %290 = vset.pattern.permute.xlu0 10
    %291 = vperm.xlu0 %290, %v184
    %v292 = vpop.permute.xlu0 %291
    %v294 = vmul.f32 %v292, %v190
    %v295 = vmul.f32 %v292, %v193
    %v297 = vrot.slane %v295, 2
    %v299 = vadd.f32 %v294, %v297
    %300 = vset.pattern.permute.xlu0 11
    %301 = vperm.xlu0 %300, %v184
    %v302 = vpop.permute.xlu0 %301
    %v304 = vmul.f32 %v302, %v190
    %v305 = vmul.f32 %v302, %v193
    %v307 = vrot.slane %v305, 2
    %v309 = vadd.f32 %v304, %v307
    %310 = vset.pattern.permute.xlu0 12
    %311 = vperm.xlu0 %310, %v184
    %v312 = vpop.permute.xlu0 %311
    %v314 = vmul.f32 %v312, %v190
    %v315 = vmul.f32 %v312, %v193
    %v317 = vrot.slane %v315, 2
    %v319 = vadd.f32 %v314, %v317
    %320 = vset.pattern.permute.xlu0 13
    %321 = vperm.xlu0 %320, %v184
    %v322 = vpop.permute.xlu0 %321
    %v324 = vmul.f32 %v322, %v190
    %v325 = vmul.f32 %v322, %v193
    %v327 = vrot.slane %v325, 2
    %v329 = vadd.f32 %v324, %v327
    %330 = vset.pattern.permute.xlu0 14
    %331 = vperm.xlu0 %330, %v184
    %v332 = vpop.permute.xlu0 %331
    %v334 = vmul.f32 %v332, %v190
    %v335 = vmul.f32 %v332, %v193
    %v337 = vrot.slane %v335, 2
    %v339 = vadd.f32 %v334, %v337
    %340 = vset.pattern.permute.xlu0 15
    %341 = vperm.xlu0 %340, %v184
    %v342 = vpop.permute.xlu0 %341
    %v344 = vmul.f32 %v342, %v190
    %v345 = vmul.f32 %v342, %v193
    %v347 = vrot.slane %v345, 2
    %v349 = vadd.f32 %v344, %v347
    %v350 = vmul.f32 %v188, %v184
    %v352 = vrot.slane %v350, 2
    %v354 = vadd.f32 %v350, %v352
    %v355 = vmul.f32 %v202, %v184
    %v357 = vrot.slane %v355, 2
    %v359 = vadd.f32 %v355, %v357
    %v360 = vmul.f32 %v212, %v184
    %v362 = vrot.slane %v360, 2
    %v364 = vadd.f32 %v360, %v362
    %v365 = vmul.f32 %v222, %v184
    %v367 = vrot.slane %v365, 2
    %v369 = vadd.f32 %v365, %v367
    %v370 = vmul.f32 %v232, %v184
    %v372 = vrot.slane %v370, 2
    %v374 = vadd.f32 %v370, %v372
    %v375 = vmul.f32 %v242, %v184
    %v377 = vrot.slane %v375, 2
    %v379 = vadd.f32 %v375, %v377
    %v380 = vmul.f32 %v252, %v184
    %v382 = vrot.slane %v380, 2
    %v384 = vadd.f32 %v380, %v382
    %v385 = vmul.f32 %v262, %v184
    %v387 = vrot.slane %v385, 2
    %v389 = vadd.f32 %v385, %v387
    %v390 = vmul.f32 %v272, %v184
    %v392 = vrot.slane %v390, 2
    %v394 = vadd.f32 %v390, %v392
    %v395 = vmul.f32 %v282, %v184
    %v397 = vrot.slane %v395, 2
    %v399 = vadd.f32 %v395, %v397
    %v400 = vmul.f32 %v292, %v184
    %v402 = vrot.slane %v400, 2
    %v404 = vadd.f32 %v400, %v402
    %v405 = vmul.f32 %v302, %v184
    %v407 = vrot.slane %v405, 2
    %v409 = vadd.f32 %v405, %v407
    %v410 = vmul.f32 %v312, %v184
    %v412 = vrot.slane %v410, 2
    %v414 = vadd.f32 %v410, %v412
    %v415 = vmul.f32 %v322, %v184
    %v417 = vrot.slane %v415, 2
    %v419 = vadd.f32 %v415, %v417
    %v420 = vmul.f32 %v332, %v184
    %v422 = vrot.slane %v420, 2
    %v424 = vadd.f32 %v420, %v422
    %v425 = vmul.f32 %v342, %v184
    %v427 = vrot.slane %v425, 2
    %v429 = vadd.f32 %v425, %v427
    %v430 = vadd.f32 %v184, %v190
    %432 = vrot.lane.b32.xlu0 %v209, 16
    %v433 = vpop.permute.xlu0 %432
    %436 = vrot.lane.b32.xlu0 %v219, 32
    %v437 = vpop.permute.xlu0 %436
    %440 = vrot.lane.b32.xlu0 %v229, 48
    %v441 = vpop.permute.xlu0 %440
    %444 = vrot.lane.b32.xlu0 %v239, 64
    %v445 = vpop.permute.xlu0 %444
    %448 = vrot.lane.b32.xlu0 %v249, 80
    %v449 = vpop.permute.xlu0 %448
    %452 = vrot.lane.b32.xlu0 %v259, 96
    %v453 = vpop.permute.xlu0 %452
    %456 = vrot.lane.b32.xlu0 %v269, 112
    %v457 = vpop.permute.xlu0 %456
    %460 = vrot.lane.b32.xlu0 %v289, 16
    %v461 = vpop.permute.xlu0 %460
    %464 = vrot.lane.b32.xlu0 %v299, 32
    %v465 = vpop.permute.xlu0 %464
    %468 = vrot.lane.b32.xlu0 %v309, 48
    %v469 = vpop.permute.xlu0 %468
    %472 = vrot.lane.b32.xlu0 %v319, 64
    %v473 = vpop.permute.xlu0 %472
    %476 = vrot.lane.b32.xlu0 %v329, 80
    %v477 = vpop.permute.xlu0 %476
    %480 = vrot.lane.b32.xlu0 %v339, 96
    %v481 = vpop.permute.xlu0 %480
    %484 = vrot.lane.b32.xlu0 %v349, 112
    %v485 = vpop.permute.xlu0 %484
    %v487 = vsel %vm133, %v199, %v433
    %v488 = vsel %vm73, %v487, %v437
    %vm489 = vcmask 392192
    %v490 = vsel %vm489, %v488, %v441
    %vm491 = vcmask 523264
    %v492 = vsel %vm491, %v490, %v445
    %vm493 = vcmask 654336
    %v494 = vsel %vm493, %v492, %v449
    %vm495 = vcmask 785408
    %v496 = vsel %vm495, %v494, %v453
    %vm497 = vcmask 916480
    %v498 = vsel %vm497, %v496, %v457
    %v499 = vsel %vm133, %v279, %v461
    %v500 = vsel %vm73, %v499, %v465
    %v501 = vsel %vm489, %v500, %v469
    %v502 = vsel %vm491, %v501, %v473
    %v503 = vsel %vm493, %v502, %v477
    %v504 = vsel %vm495, %v503, %v481
    %v505 = vsel %vm497, %v504, %v485
    %507 = vrot.lane.b32.xlu0 %v359, 16
    %v508 = vpop.permute.xlu0 %507
    %511 = vrot.lane.b32.xlu0 %v364, 32
    %v512 = vpop.permute.xlu0 %511
    %515 = vrot.lane.b32.xlu0 %v369, 48
    %v516 = vpop.permute.xlu0 %515
    %519 = vrot.lane.b32.xlu0 %v374, 64
    %v520 = vpop.permute.xlu0 %519
    %523 = vrot.lane.b32.xlu0 %v379, 80
    %v524 = vpop.permute.xlu0 %523
    %527 = vrot.lane.b32.xlu0 %v384, 96
    %v528 = vpop.permute.xlu0 %527
    %531 = vrot.lane.b32.xlu0 %v389, 112
    %v532 = vpop.permute.xlu0 %531
    %535 = vrot.lane.b32.xlu0 %v399, 16
    %v536 = vpop.permute.xlu0 %535
    %539 = vrot.lane.b32.xlu0 %v404, 32
    %v540 = vpop.permute.xlu0 %539
    %543 = vrot.lane.b32.xlu0 %v409, 48
    %v544 = vpop.permute.xlu0 %543
    %547 = vrot.lane.b32.xlu0 %v414, 64
    %v548 = vpop.permute.xlu0 %547
    %551 = vrot.lane.b32.xlu0 %v419, 80
    %v552 = vpop.permute.xlu0 %551
    %555 = vrot.lane.b32.xlu0 %v424, 96
    %v556 = vpop.permute.xlu0 %555
    %559 = vrot.lane.b32.xlu0 %v429, 112
    %v560 = vpop.permute.xlu0 %559
    %v562 = vsel %vm133, %v354, %v508
    %v563 = vsel %vm73, %v562, %v512
    %v564 = vsel %vm489, %v563, %v516
    %v565 = vsel %vm491, %v564, %v520
    %v566 = vsel %vm493, %v565, %v524
    %v567 = vsel %vm495, %v566, %v528
    %v568 = vsel %vm497, %v567, %v532
    %v569 = vsel %vm133, %v394, %v536
    %v570 = vsel %vm73, %v569, %v540
    %v571 = vsel %vm489, %v570, %v544
    %v572 = vsel %vm491, %v571, %v548
    %v573 = vsel %vm493, %v572, %v552
    %v574 = vsel %vm495, %v573, %v556
    %v575 = vsel %vm497, %v574, %v560
    %v576 = vpack.c.bf16 %v498, %v498
    %v577 = vpack.c.bf16 %v505, %v505
    %v578 = vpack.c.bf16 %v568, %v568
    %v579 = vpack.c.bf16 %v575, %v575
    %v580 = vpack.c.bf16 %v430, %v430
    %v581 = vld [vmem:[#allocation3] sm:$0xf]
    %v582 = vld [vmem:[#allocation3 + $0x4] sm:$0xf]
    %v583 = vld [vmem:[#allocation3 + $0x8] sm:$0xf]
    %v584 = vld [vmem:[#allocation3 + $0xc] sm:$0xf]
    %v585 = vld [vmem:[#allocation3 + $0x10] sm:$0xf]
    %v586 = vld [vmem:[#allocation3 + $0x14] sm:$0xf]
    %v587 = vld [vmem:[#allocation3 + $0x18] sm:$0xf]
    %v588 = vld [vmem:[#allocation3 + $0x1c] sm:$0xf]
    %v589 = vld [vmem:[#allocation3 + $0x20] sm:$0xf]
    %v590 = vld [vmem:[#allocation3 + $0x24] sm:$0xf]
    %v591 = vld [vmem:[#allocation3 + $0x28] sm:$0xf]
    %v592 = vld [vmem:[#allocation3 + $0x2c] sm:$0xf]
    %v593 = vld [vmem:[#allocation3 + $0x30] sm:$0xf]
    %v594 = vld [vmem:[#allocation3 + $0x34] sm:$0xf]
    %v595 = vld [vmem:[#allocation3 + $0x38] sm:$0xf]
    %v596 = vld [vmem:[#allocation3 + $0x3c] sm:$0xf]
    %v597 = vld [vmem:[#allocation3 + $0x40] sm:$0xf]
    %v598 = vld [vmem:[#allocation3 + $0x44] sm:$0xf]
    %v599 = vld [vmem:[#allocation3 + $0x48] sm:$0xf]
    %v600 = vld [vmem:[#allocation3 + $0x4c] sm:$0xf]
    %v601 = vld [vmem:[#allocation3 + $0x50] sm:$0xf]
    %v602 = vld [vmem:[#allocation3 + $0x54] sm:$0xf]
    %v603 = vld [vmem:[#allocation3 + $0x58] sm:$0xf]
    %v604 = vld [vmem:[#allocation3 + $0x5c] sm:$0xf]
    %v605 = vld [vmem:[#allocation3 + $0x60] sm:$0xf]
    %v606 = vld [vmem:[#allocation3 + $0x64] sm:$0xf]
    %v607 = vld [vmem:[#allocation3 + $0x68] sm:$0xf]
    %v608 = vld [vmem:[#allocation3 + $0x6c] sm:$0xf]
    %v609 = vld [vmem:[#allocation3 + $0x70] sm:$0xf]
    %v610 = vld [vmem:[#allocation3 + $0x74] sm:$0xf]
    %v611 = vld [vmem:[#allocation3 + $0x78] sm:$0xf]
    %v612 = vld [vmem:[#allocation3 + $0x7c] sm:$0xf]
    %v613 = vld [vmem:[#allocation3 + $0x80] sm:$0xf]
    %v614 = vld [vmem:[#allocation3 + $0x84] sm:$0xf]
    %v615 = vld [vmem:[#allocation3 + $0x88] sm:$0xf]
    %v616 = vld [vmem:[#allocation3 + $0x8c] sm:$0xf]
    %v617 = vld [vmem:[#allocation3 + $0x90] sm:$0xf]
    %v618 = vld [vmem:[#allocation3 + $0x94] sm:$0xf]
    %v619 = vld [vmem:[#allocation3 + $0x98] sm:$0xf]
    %v620 = vld [vmem:[#allocation3 + $0x9c] sm:$0xf]
    %v621 = vld [vmem:[#allocation3 + $0xa0] sm:$0xf]
    %v622 = vld [vmem:[#allocation3 + $0xa4] sm:$0xf]
    %v623 = vld [vmem:[#allocation3 + $0xa8] sm:$0xf]
    %v624 = vld [vmem:[#allocation3 + $0xac] sm:$0xf]
    %v625 = vld [vmem:[#allocation3 + $0xb0] sm:$0xf]
    %v626 = vld [vmem:[#allocation3 + $0xb4] sm:$0xf]
    %v627 = vld [vmem:[#allocation3 + $0xb8] sm:$0xf]
    %v628 = vld [vmem:[#allocation3 + $0xbc] sm:$0xf]
    %v629 = vld [vmem:[#allocation3 + $0xc0] sm:$0xf]
    %v630 = vld [vmem:[#allocation3 + $0xc4] sm:$0xf]
    %v631 = vld [vmem:[#allocation3 + $0xc8] sm:$0xf]
    %v632 = vld [vmem:[#allocation3 + $0xcc] sm:$0xf]
    %v633 = vld [vmem:[#allocation3 + $0xd0] sm:$0xf]
    %v634 = vld [vmem:[#allocation3 + $0xd4] sm:$0xf]
    %v635 = vld [vmem:[#allocation3 + $0xd8] sm:$0xf]
    %v636 = vld [vmem:[#allocation3 + $0xdc] sm:$0xf]
    %v637 = vld [vmem:[#allocation3 + $0xe0] sm:$0xf]
    %v638 = vld [vmem:[#allocation3 + $0xe4] sm:$0xf]
    %v639 = vld [vmem:[#allocation3 + $0xe8] sm:$0xf]
    %v640 = vld [vmem:[#allocation3 + $0xec] sm:$0xf]
    %v641 = vld [vmem:[#allocation3 + $0xf0] sm:$0xf]
    %v642 = vld [vmem:[#allocation3 + $0xf4] sm:$0xf]
    %v643 = vld [vmem:[#allocation3 + $0xf8] sm:$0xf]
    %v644 = vld [vmem:[#allocation3 + $0xfc] sm:$0xf]
    %v645 = vld [vmem:[#allocation3 + $0x100] sm:$0xf]
    %v646 = vld [vmem:[#allocation3 + $0x104] sm:$0xf]
    %v647 = vld [vmem:[%s6] sm:$0x1]
    %v649 = vlaneseq
    %v650 = vshrl.u32 %v649, 7
    %v651 = vsub.s32 0, %v650
    %v652 = vrot.slane %v647, %v651
    %v720 = vunpack.c.l.b16 %v581
    %v721 = vunpack.c.l.b16 %v582
    %v722 = vunpack.c.l.b16 %v583
    %v723 = vunpack.c.l.b16 %v584
    %v724 = vunpack.c.l.b16 %v585
    %v725 = vunpack.c.l.b16 %v586
    %v726 = vunpack.c.l.b16 %v587
    %v727 = vunpack.c.l.b16 %v588
    %v728 = vunpack.c.l.b16 %v589
    %v729 = vunpack.c.l.b16 %v590
    %v730 = vunpack.c.l.b16 %v591
    %v731 = vunpack.c.l.b16 %v592
    %v732 = vunpack.c.l.b16 %v593
    %v733 = vunpack.c.l.b16 %v594
    %v734 = vunpack.c.l.b16 %v595
    %v735 = vunpack.c.l.b16 %v596
    %v736 = vunpack.c.l.b16 %v597
    %v737 = vunpack.c.l.b16 %v598
    %v738 = vunpack.c.l.b16 %v599
    %v739 = vunpack.c.l.b16 %v600
    %v740 = vunpack.c.l.b16 %v601
    %v741 = vunpack.c.l.b16 %v602
    %v742 = vunpack.c.l.b16 %v603
    %v743 = vunpack.c.l.b16 %v604
    %v744 = vunpack.c.l.b16 %v605
    %v745 = vunpack.c.l.b16 %v606
    %v746 = vunpack.c.l.b16 %v607
    %v747 = vunpack.c.l.b16 %v608
    %v748 = vunpack.c.l.b16 %v609
    %v749 = vunpack.c.l.b16 %v610
    %v750 = vunpack.c.l.b16 %v611
    %v751 = vunpack.c.l.b16 %v612
    %v752 = vunpack.c.l.b16 %v613
    %v753 = vunpack.c.l.b16 %v614
    %v754 = vunpack.c.l.b16 %v615
    %v755 = vunpack.c.l.b16 %v616
    %v756 = vunpack.c.l.b16 %v617
    %v757 = vunpack.c.l.b16 %v618
    %v758 = vunpack.c.l.b16 %v619
    %v759 = vunpack.c.l.b16 %v620
    %v760 = vunpack.c.l.b16 %v621
    %v761 = vunpack.c.l.b16 %v622
    %v762 = vunpack.c.l.b16 %v623
    %v763 = vunpack.c.l.b16 %v624
    %v764 = vunpack.c.l.b16 %v625
    %v765 = vunpack.c.l.b16 %v626
    %v766 = vunpack.c.l.b16 %v627
    %v767 = vunpack.c.l.b16 %v628
    %v768 = vunpack.c.l.b16 %v629
    %v769 = vunpack.c.l.b16 %v630
    %v770 = vunpack.c.l.b16 %v631
    %v771 = vunpack.c.l.b16 %v632
    %v772 = vunpack.c.l.b16 %v633
    %v773 = vunpack.c.l.b16 %v634
    %v774 = vunpack.c.l.b16 %v635
    %v775 = vunpack.c.l.b16 %v636
    %v776 = vunpack.c.l.b16 %v637
    %v777 = vunpack.c.l.b16 %v638
    %v778 = vunpack.c.l.b16 %v639
    %v779 = vunpack.c.l.b16 %v640
    %v780 = vunpack.c.l.b16 %v641
    %v781 = vunpack.c.l.b16 %v642
    %v782 = vunpack.c.l.b16 %v643
    %v783 = vunpack.c.l.b16 %v644
    %v784 = vunpack.c.l.b16 %v645
    %v785 = vunpack.c.l.b16 %v646
    %v786 = vpack.c.b16 %v721, %v720
    %v787 = vpack.c.b16 %v723, %v722
    %v788 = vpack.c.b16 %v725, %v724
    %v789 = vpack.c.b16 %v727, %v726
    %v790 = vpack.c.b16 %v729, %v728
    %v791 = vpack.c.b16 %v731, %v730
    %v792 = vpack.c.b16 %v733, %v732
    %v793 = vpack.c.b16 %v735, %v734
    %v794 = vpack.c.b16 %v737, %v736
    %v795 = vpack.c.b16 %v739, %v738
    %v796 = vpack.c.b16 %v741, %v740
    %v797 = vpack.c.b16 %v743, %v742
    %v798 = vpack.c.b16 %v745, %v744
    %v799 = vpack.c.b16 %v747, %v746
    %v800 = vpack.c.b16 %v749, %v748
    %v801 = vpack.c.b16 %v751, %v750
    %v802 = vpack.c.b16 %v753, %v752
    %v803 = vpack.c.b16 %v755, %v754
    %v804 = vpack.c.b16 %v757, %v756
    %v805 = vpack.c.b16 %v759, %v758
    %v806 = vpack.c.b16 %v761, %v760
    %v807 = vpack.c.b16 %v763, %v762
    %v808 = vpack.c.b16 %v765, %v764
    %v809 = vpack.c.b16 %v767, %v766
    %v810 = vpack.c.b16 %v769, %v768
    %v811 = vpack.c.b16 %v771, %v770
    %v812 = vpack.c.b16 %v773, %v772
    %v813 = vpack.c.b16 %v775, %v774
    %v814 = vpack.c.b16 %v777, %v776
    %v815 = vpack.c.b16 %v779, %v778
    %v816 = vpack.c.b16 %v781, %v780
    %v817 = vpack.c.b16 %v783, %v782
    %v818 = vpack.c.b16 %v785, %v784
    %v853 = vsel %vm133, %v580, 0
    %855 = vmatprep.subr.bf16.mxu0 0
    %856 = vmatpush1.bf16.msra.mxu0 %v793
    %857 = vmatprep.subr.bf16.mxu0 0
    %858 = vmatpush1.bf16.msra.mxu0 %v792
    %859 = vmatprep.subr.bf16.mxu0 0
    %860 = vmatpush1.bf16.msra.mxu0 %v791
    %861 = vmatprep.subr.bf16.mxu0 0
    %862 = vmatpush1.bf16.msra.mxu0 %v790
    %863 = vmatprep.subr.bf16.mxu0 0
    %864 = vmatpush1.bf16.msra.mxu0 %v789
    %865 = vmatprep.subr.bf16.mxu0 0
    %866 = vmatpush1.bf16.msra.mxu0 %v788
    %867 = vmatprep.subr.bf16.mxu0 0
    %868 = vmatpush1.bf16.msra.mxu0 %v787
    %869 = vmatprep.subr.bf16.mxu0 0
    %870 = vmatpush1.bf16.msra.mxu0 %v786
    %871 = vmatprep.subr.bf16.mxu0 0
    %872 = vmatpush2.bf16.msra.mxu0 %v801
    %873 = vmatprep.subr.bf16.mxu0 0
    %874 = vmatpush2.bf16.msra.mxu0 %v800
    %875 = vmatprep.subr.bf16.mxu0 0
    %876 = vmatpush2.bf16.msra.mxu0 %v799
    %877 = vmatprep.subr.bf16.mxu0 0
    %878 = vmatpush2.bf16.msra.mxu0 %v798
    %879 = vmatprep.subr.bf16.mxu0 0
    %880 = vmatpush2.bf16.msra.mxu0 %v797
    %881 = vmatprep.subr.bf16.mxu0 0
    %882 = vmatpush2.bf16.msra.mxu0 %v796
    %883 = vmatprep.subr.bf16.mxu0 0
    %884 = vmatpush2.bf16.msra.mxu0 %v795
    %885 = vmatprep.subr.bf16.mxu0 0
    %886 = vmatpush2.bf16.msra.mxu0 %v794
    %887 = vmatprep.mubr.bf16.mxu0 %v577
    %888 = vmatmul.mubr.bf16.gmra.mxu0 %v576
    %v889 = vpop.f32.mrf.mxu0
    %v890 = vadd.f32 %v652, %v889
    %v891 = vpop.f32.mrf.mxu0
    %v892 = vpop.f32.mrf.mxu0
    %v893 = vpop.f32.mrf.mxu0
    %894 = vdwg.mxu0
    %895 = vmatprep.subr.bf16.mxu0 0
    %896 = vmatpush1.bf16.msra.mxu0 %v809
    %897 = vmatprep.subr.bf16.mxu0 0
    %898 = vmatpush1.bf16.msra.mxu0 %v808
    %899 = vmatprep.subr.bf16.mxu0 0
    %900 = vmatpush1.bf16.msra.mxu0 %v807
    %901 = vmatprep.subr.bf16.mxu0 0
    %902 = vmatpush1.bf16.msra.mxu0 %v806
    %903 = vmatprep.subr.bf16.mxu0 0
    %904 = vmatpush1.bf16.msra.mxu0 %v805
    %905 = vmatprep.subr.bf16.mxu0 0
    %906 = vmatpush1.bf16.msra.mxu0 %v804
    %907 = vmatprep.subr.bf16.mxu0 0
    %908 = vmatpush1.bf16.msra.mxu0 %v803
    %909 = vmatprep.subr.bf16.mxu0 0
    %910 = vmatpush1.bf16.msra.mxu0 %v802
    %911 = vmatprep.subr.bf16.mxu0 0
    %912 = vmatpush2.bf16.msra.mxu0 %v817
    %913 = vmatprep.subr.bf16.mxu0 0
    %914 = vmatpush2.bf16.msra.mxu0 %v816
    %915 = vmatprep.subr.bf16.mxu0 0
    %916 = vmatpush2.bf16.msra.mxu0 %v815
    %917 = vmatprep.subr.bf16.mxu0 0
    %918 = vmatpush2.bf16.msra.mxu0 %v814
    %919 = vmatprep.subr.bf16.mxu0 0
    %920 = vmatpush2.bf16.msra.mxu0 %v813
    %921 = vmatprep.subr.bf16.mxu0 0
    %922 = vmatpush2.bf16.msra.mxu0 %v812
    %923 = vmatprep.subr.bf16.mxu0 0
    %924 = vmatpush2.bf16.msra.mxu0 %v811
    %925 = vmatprep.subr.bf16.mxu0 0
    %926 = vmatpush2.bf16.msra.mxu0 %v810
    %927 = vmatprep.mubr.bf16.mxu0 %v579
    %928 = vmatmul.mubr.bf16.gmra.mxu0 %v578
    %v929 = vpop.f32.mrf.mxu0
    %v930 = vadd.f32 %v890, %v929
    %v931 = vpop.f32.mrf.mxu0
    %v932 = vpop.f32.mrf.mxu0
    %v933 = vpop.f32.mrf.mxu0
    %934 = vdwg.mxu0
    %935 = vmatprep.subr.bf16.mxu0 0
    %936 = vmatpush1.bf16.msra.mxu0 0
    %937 = vmatprep.subr.bf16.mxu0 0
    %938 = vmatpush1.bf16.msra.mxu0 0
    %939 = vmatprep.subr.bf16.mxu0 0
    %940 = vmatpush1.bf16.msra.mxu0 0
    %941 = vmatprep.subr.bf16.mxu0 0
    %942 = vmatpush1.bf16.msra.mxu0 0
    %943 = vmatprep.subr.bf16.mxu0 0
    %944 = vmatpush1.bf16.msra.mxu0 0
    %945 = vmatprep.subr.bf16.mxu0 0
    %946 = vmatpush1.bf16.msra.mxu0 0
    %947 = vmatprep.subr.bf16.mxu0 0
    %948 = vmatpush1.bf16.msra.mxu0 0
    %949 = vmatprep.subr.bf16.mxu0 0
    %950 = vmatpush1.bf16.msra.mxu0 %v818
    %951 = vmatprep.subr.bf16.mxu0 0
    %952 = vmatpush2.bf16.msra.mxu0 0
    %953 = vmatprep.subr.bf16.mxu0 0
    %954 = vmatpush2.bf16.msra.mxu0 0
    %955 = vmatprep.subr.bf16.mxu0 0
    %956 = vmatpush2.bf16.msra.mxu0 0
    %957 = vmatprep.subr.bf16.mxu0 0
    %958 = vmatpush2.bf16.msra.mxu0 0
    %959 = vmatprep.subr.bf16.mxu0 0
    %960 = vmatpush2.bf16.msra.mxu0 0
    %961 = vmatprep.subr.bf16.mxu0 0
    %962 = vmatpush2.bf16.msra.mxu0 0
    %963 = vmatprep.subr.bf16.mxu0 0
    %964 = vmatpush2.bf16.msra.mxu0 0
    %965 = vmatprep.subr.bf16.mxu0 0
    %966 = vmatpush2.bf16.msra.mxu0 0
    %967 = vmatprep.mubr.bf16.mxu0 0
    %968 = vmatmul.mubr.bf16.gmra.mxu0 %v853
    %v969 = vpop.f32.mrf.mxu0
    %v970 = vadd.f32 %v930, %v969
    %v971 = vpop.f32.mrf.mxu0
    %v972 = vpop.f32.mrf.mxu0
    %v973 = vpop.f32.mrf.mxu0
    %974 = vdwg.mxu0
    %v975 = vmax.f32 %v970, 0.0
    %v976 = vld [vmem:[%s7] sm:$0x1]
    %v977 = vunpack.c.l.bf16 %v976
    %v978 = vlaneseq
    %v979 = vshrl.u32 %v978, 7
    %v980 = vsub.s32 0, %v979
    %v981 = vrot.slane %v977, %v980
    %v982 = vmul.f32 %v975, %v981
    %vm983 = vcmask 1041408
    %v984 = vsel %vm983, %v982, 0.0
    %985 = vadd.xlane.f32.xlu0 %v984
    %v986 = vpop.xlane.xlu0 %985
    %v987 = vld [vmem:[#allocation2] sm:$0x1]
    %v989 = vlaneseq
    %v990 = vshrl.u32 %v989, 7
    %v991 = vsub.s32 0, %v990
    %v992 = vrot.slane %v987, %v991
    %v994 = vadd.f32 %v986, %v992
    %996 = vset.pattern.permute.xlu0 0
    %997 = vperm.xlu0 %996, %v994
    %v998 = vpop.permute.xlu0 %997
    %1000 = vst [vmem:[%s9] sm:$0x3] %v998
    // Predicated region
    $region42: #{ldawccn_forward.1} parent=1 // pred_check
      _
    $region43: #{ldawccn_forward.1} parent=1 // pred_check_branch
      %1002 = sbr.rel (0) target = $region45
    $region44: #{ldawccn_forward.1} parent=1 // pred_region
      _
    $region45: #{ldawccn_forward.1} parent=1 // pred_fallthru
      _
    // Predicated region
    $region46: #{ldawccn_forward.1} parent=1 // pred_check
      _
    $region47: #{ldawccn_forward.1} parent=1 // pred_check_branch
      %1004 = sbr.rel (0) target = $region49
    $region48: #{ldawccn_forward.1} parent=1 // pred_region
      _
    $region49: #{ldawccn_forward.1} parent=1 // pred_fallthru
      _
    %1005 = vsyncpa [#allocation4], 1

</llo_original>
